<compile_context>
chip_gen: v6e
topology: v6e:2x2x1
jax: 0.10.0
libtpu: 0.0.40
codegen_flags: <defaults>
</compile_context>

<pallas_src>
import functools

import jax
import jax.numpy as jnp
from jax import lax
from jax.experimental import pallas as pl
from jax.experimental.pallas import tpu as pltpu

_LANES = 128
_SUBLANES = 8

# Abramowitz & Stegun 4.4.46: acos(x) = sqrt(1-x) * P(x), 0 <= x <= 1.
_ACOS_COEFFS = (
    1.5707963050,
    -0.2145988016,
    0.0889789874,
    -0.0501743046,
    0.0308918810,
    -0.0170881256,
    0.0066700901,
    -0.0012624911,
)


def _cdiv(a, b):
    return -(-a // b)


def _acos(x):
    """Elementwise arccos using only mul/add/sqrt/select (Mosaic-safe).

    Max approximation error ~2e-8 (+ f32 roundoff).
    """
    a = jnp.abs(x)
    p = _ACOS_COEFFS[-1]
    for c in _ACOS_COEFFS[-2::-1]:
        p = p * a + c
    r = jnp.sqrt(1.0 - a) * p          # acos(|x|) in [0, pi/2]
    return jnp.where(x >= 0.0, r, jnp.pi - r)


def _simiangle_kernel(p_ref, w_ref, o_ref, acc_ref, *, eps):
    # p_ref block: (4, TS, 128) = [x0, x1, y0, y1] boundary-pair stream
    # w_ref block: (TS, 128)    = signed per-element weights (scale folded in)
    # o_ref block: (1, 1)       = per-batch partial sum
    s = pl.program_id(1)

    @pl.when(s == 0)
    def _init():
        acc_ref[...] = jnp.zeros_like(acc_ref)

    x0 = p_ref[0].astype(jnp.float32)
    x1 = p_ref[1].astype(jnp.float32)
    y0 = p_ref[2].astype(jnp.float32)
    y1 = p_ref[3].astype(jnp.float32)

    frac = x0 * x1 + y0 * y1
    denom = jnp.sqrt(x0 * x0 + y0 * y0) * jnp.sqrt(x1 * x1 + y1 * y1) + eps
    # Clamp protects sqrt(1-|x|) against fp roundoff pushing |ratio| above 1.
    ratio = jnp.clip(frac / denom, -1.0, 1.0)
    # Lane-wide accumulation (plain VPU adds); padded elements have weight 0.
    acc_ref[...] += _acos(ratio) * w_ref[...]

    @pl.when(s == pl.num_programs(1) - 1)
    def _finalize():
        # One cross-lane reduce + 1-element store per batch.
        o_ref[...] = jnp.sum(acc_ref[...], axis=(0, 1),
                             keepdims=True).astype(o_ref.dtype)


def simiangle_loss(field: jax.Array) -> jax.Array:
    """Pallas equivalent of simiangleLoss().forward(field). field: [B,C,D,H,W]."""
    B, C, D, H, W = field.shape
    assert C >= 2, "simiangleLoss uses channels 0 and 1"
    assert D >= 3 and H >= 3 and W >= 3, "need >=3 samples along D, H, W"
    eps = 1e-3

    # --- Wrapper-side layout plumbing (tiny boundary slabs only) -------------
    # Telescoping: sum_i(t_bwd - t_fwd) along an axis = theta(first adjacent
    # pair) - theta(last adjacent pair), so only 2 two-plane slabs per axis
    # are needed. Each slab is rearranged to (B, 4=[x0,x1,y0,y1], flat).
    def flat_pair(slab, pair_axis):
        perm = (0, 1, pair_axis) + tuple(a for a in range(2, 5) if a != pair_axis)
        s = jnp.transpose(slab, perm)            # (B, 2ch, 2pair, r0, r1)
        return s.reshape(B, 4, -1)               # (B, 4, r0*r1)

    wd = 1.0 / (3.0 * B * (D - 2) * H * W)
    wh = 1.0 / (3.0 * B * D * (H - 2) * W)
    ww = 1.0 / (3.0 * B * D * H * (W - 2))
    slabs = [
        (field[:, :2, 0:2, :, :],       2, +wd),   # D axis, first pair
        (field[:, :2, D - 2:D, :, :],   2, -wd),   # D axis, last pair
        (field[:, :2, :, 0:2, :],       3, +wh),   # H axis, first pair
        (field[:, :2, :, H - 2:H, :],   3, -wh),   # H axis, last pair
        (field[:, :2, :, :, 0:2],       4, +ww),   # W axis, first pair
        (field[:, :2, :, :, W - 2:W],   4, -ww),   # W axis, last pair
    ]
    flat_parts, w_parts = [], []
    for slab, pax, wgt in slabs:
        fp = flat_pair(slab, pax)
        flat_parts.append(fp)
        w_parts.append(jnp.full((fp.shape[-1],), wgt, jnp.float32))
    pairs = jnp.concatenate(flat_parts, axis=-1)      # (B, 4, R_raw)
    weights = jnp.concatenate(w_parts)                # (R_raw,)

    # Re-tile the flat pair stream lane-dense as (S, 128); pad with zeros
    # (weight 0 -> zero contribution; ratio=0 -> finite acos, no NaN).
    R_raw = pairs.shape[-1]
    s_raw = _cdiv(R_raw, _LANES)
    n_chunks = max(1, _cdiv(s_raw, 1024))             # cap block at ~2 MiB
    TS = _cdiv(_cdiv(s_raw, n_chunks), _SUBLANES) * _SUBLANES
    S = TS * n_chunks
    R_pad = S * _LANES
    if R_pad != R_raw:
        pairs = jnp.pad(pairs, ((0, 0), (0, 0), (0, R_pad - R_raw)))
        weights = jnp.pad(weights, (0, R_pad - R_raw))
    pairs = pairs.reshape(B, 4, S, _LANES)
    weights = weights.reshape(S, _LANES)

    kernel = functools.partial(_simiangle_kernel, eps=eps)

    partials = pl.pallas_call(
        kernel,
        out_shape=jax.ShapeDtypeStruct((B, 1, 1), jnp.float32),
        grid_spec=pltpu.PrefetchScalarGridSpec(
            num_scalar_prefetch=0,
            grid=(B, n_chunks),
            in_specs=[
                # Pair stream: B squeezed, all 4 components, TS x 128 tile.
                pl.BlockSpec((None, 4, TS, _LANES), lambda b, s: (b, 0, s, 0)),
                # Weights: batch-independent TS x 128 tile.
                pl.BlockSpec((TS, _LANES), lambda b, s: (s, 0)),
            ],
            out_specs=pl.BlockSpec((None, 1, 1), lambda b, s: (b, 0, 0)),
            scratch_shapes=[pltpu.VMEM((TS, _LANES), jnp.float32)],
        ),
        compiler_params=pltpu.CompilerParams(
            # Batch axis is parallel (per-batch partials) so v7x can split it
            # across both TensorCores; chunk axis accumulates sequentially.
            dimension_semantics=("parallel", "arbitrary"),
        ),
    )(pairs, weights)

    # Tiny cross-batch reduction + abs in the wrapper.
    return jnp.abs(jnp.sum(partials))


if __name__ == "__main__":
    key = jax.random.PRNGKey(0)
    # Small 5-D field: [B, C, D, H, W]
    B, C, D, H, W = 2, 2, 4, 8, 16
    field = jax.random.normal(key, (B, C, D, H, W), dtype=jnp.float32)

    loss = jax.block_until_ready(simiangle_loss(field))

    # Pure-JAX reference mirroring the PyTorch forward (full, non-telescoped).
    dx = field[:, 0]
    dy = field[:, 1]
    dist = jnp.sqrt(dx * dx + dy * dy)
    eps = jnp.float32(0.001)

    def ref_term(axis):
        n = dx.shape[axis]
        c = lambda a: lax.slice_in_dim(a, 1, n - 1, axis=axis)
        m = lambda a: lax.slice_in_dim(a, 0, n - 2, axis=axis)
        p = lambda a: lax.slice_in_dim(a, 2, n, axis=axis)
        f1 = c(dx) * m(dx) + c(dy) * m(dy)
        f2 = c(dx) * p(dx) + c(dy) * p(dy)
        t1 = jnp.arccos(f1 / (c(dist) * m(dist) + eps))
        t2 = jnp.arccos(f2 / (c(dist) * p(dist) + eps))
        return jnp.mean(t1 - t2)

    ref = jnp.abs((ref_term(1) + ref_term(2) + ref_term(3)) / 3.0)

    assert jnp.allclose(loss, ref, rtol=1e-3, atol=1e-4), (loss, ref)
    print("KERNEL_OK")
</pallas_src>

<mosaic_0001>
module attributes {stable_mosaic.version = 11 : i64} {
  func.func @_simiangle_kernel(%arg0: i32, %arg1: i32, %arg2: memref<1x4x8x128xf32, #tpu.memory_space<vmem>>, %arg3: memref<8x128xf32, #tpu.memory_space<vmem>>, %arg4: memref<1x1x1xf32, #tpu.memory_space<vmem>>, %arg5: memref<8x128xf32, #tpu.memory_space<vmem>>) attributes {dimension_semantics = [#tpu.dimension_semantics<parallel>, #tpu.dimension_semantics<arbitrary>], iteration_bounds = array<i64: 2, 1>, scalar_prefetch = 0 : i64, scratch_operands = 1 : i64, tpu.core_type = #tpu.core_type<tc>, window_params = [{transform_indices = @transform_0, window_bounds = array<i64: 1, 4, 8, 128>}, {transform_indices = @transform_1, window_bounds = array<i64: 8, 128>}, {transform_indices = @transform_2, window_bounds = array<i64: 1, 1, 1>}]} {
    %c0_i32 = arith.constant 0 : i32
    %0 = arith.cmpi eq, %arg1, %c0_i32 : i32
    %1 = arith.extui %0 : i1 to i32
    %c0_i32_0 = arith.constant 0 : i32
    %2 = arith.cmpi ne, %1, %c0_i32_0 : i32
    scf.if %2 {
      %cst_34 = arith.constant 0.000000e+00 : f32
      %70 = vector.broadcast %cst_34 : f32 to vector<8x128xf32>
      %c0_35 = arith.constant 0 : index
      %c0_36 = arith.constant 0 : index
      %71 = vector.load %arg5[%c0_35, %c0_36] : memref<8x128xf32, #tpu.memory_space<vmem>>, vector<8x128xf32>
      tpu.vector_store %arg5[%c0_35, %c0_36], %70 {strides = array<i32>} : memref<8x128xf32, #tpu.memory_space<vmem>>, vector<8x128xf32>,
    } else {
    }
    %c0 = arith.constant 0 : index
    %c0_1 = arith.constant 0 : index
    %c0_2 = arith.constant 0 : index
    %c0_3 = arith.constant 0 : index
    %3 = vector.load %arg2[%c0, %c0_1, %c0_2, %c0_3] : memref<1x4x8x128xf32, #tpu.memory_space<vmem>>, vector<1x1x8x128xf32>
    %4 = vector.shape_cast %3 : vector<1x1x8x128xf32> to vector<8x128xf32>
    %c0_4 = arith.constant 0 : index
    %c1 = arith.constant 1 : index
    %c0_5 = arith.constant 0 : index
    %c0_6 = arith.constant 0 : index
    %5 = vector.load %arg2[%c0_4, %c1, %c0_5, %c0_6] : memref<1x4x8x128xf32, #tpu.memory_space<vmem>>, vector<1x1x8x128xf32>
    %6 = vector.shape_cast %5 : vector<1x1x8x128xf32> to vector<8x128xf32>
    %c0_7 = arith.constant 0 : index
    %c2 = arith.constant 2 : index
    %c0_8 = arith.constant 0 : index
    %c0_9 = arith.constant 0 : index
    %7 = vector.load %arg2[%c0_7, %c2, %c0_8, %c0_9] : memref<1x4x8x128xf32, #tpu.memory_space<vmem>>, vector<1x1x8x128xf32>
    %8 = vector.shape_cast %7 : vector<1x1x8x128xf32> to vector<8x128xf32>
    %c0_10 = arith.constant 0 : index
    %c3 = arith.constant 3 : index
    %c0_11 = arith.constant 0 : index
    %c0_12 = arith.constant 0 : index
    %9 = vector.load %arg2[%c0_10, %c3, %c0_11, %c0_12] : memref<1x4x8x128xf32, #tpu.memory_space<vmem>>, vector<1x1x8x128xf32>
    %10 = vector.shape_cast %9 : vector<1x1x8x128xf32> to vector<8x128xf32>
    %11 = arith.mulf %4, %6 : vector<8x128xf32>
    %12 = arith.mulf %8, %10 : vector<8x128xf32>
    %13 = arith.addf %11, %12 : vector<8x128xf32>
    %14 = arith.mulf %4, %4 : vector<8x128xf32>
    %15 = arith.mulf %8, %8 : vector<8x128xf32>
    %16 = arith.addf %14, %15 : vector<8x128xf32>
    %17 = math.sqrt %16 : vector<8x128xf32>
    %18 = arith.mulf %6, %6 : vector<8x128xf32>
    %19 = arith.mulf %10, %10 : vector<8x128xf32>
    %20 = arith.addf %18, %19 : vector<8x128xf32>
    %21 = math.sqrt %20 : vector<8x128xf32>
    %22 = arith.mulf %17, %21 : vector<8x128xf32>
    %cst = arith.constant 1.000000e-03 : f32
    %23 = vector.broadcast %cst : f32 to vector<8x128xf32>
    %24 = arith.addf %22, %23 : vector<8x128xf32>
    %25 = arith.divf %13, %24 : vector<8x128xf32>
    %cst_13 = arith.constant -1.000000e+00 : f32
    %cst_14 = arith.constant 1.000000e+00 : f32
    %26 = vector.broadcast %cst_13 : f32 to vector<8x128xf32>
    %27 = arith.maximumf %26, %25 : vector<8x128xf32>
    %28 = vector.broadcast %cst_14 : f32 to vector<8x128xf32>
    %29 = arith.minimumf %28, %27 : vector<8x128xf32>
    %c0_15 = arith.constant 0 : index
    %c0_16 = arith.constant 0 : index
    %30 = vector.load %arg5[%c0_15, %c0_16] : memref<8x128xf32, #tpu.memory_space<vmem>>, vector<8x128xf32>
    %31 = math.absf %29 : vector<8x128xf32>
    %cst_17 = arith.constant -0.0012624911 : f32
    %32 = vector.broadcast %cst_17 : f32 to vector<8x128xf32>
    %33 = arith.mulf %32, %31 : vector<8x128xf32>
    %cst_18 = arith.constant 6.670090e-03 : f32
    %34 = vector.broadcast %cst_18 : f32 to vector<8x128xf32>
    %35 = arith.addf %33, %34 : vector<8x128xf32>
    %36 = arith.mulf %35, %31 : vector<8x128xf32>
    %cst_19 = arith.constant -0.0170881264 : f32
    %37 = vector.broadcast %cst_19 : f32 to vector<8x128xf32>
    %38 = arith.addf %36, %37 : vector<8x128xf32>
    %39 = arith.mulf %38, %31 : vector<8x128xf32>
    %cst_20 = arith.constant 0.0308918804 : f32
    %40 = vector.broadcast %cst_20 : f32 to vector<8x128xf32>
    %41 = arith.addf %39, %40 : vector<8x128xf32>
    %42 = arith.mulf %41, %31 : vector<8x128xf32>
    %cst_21 = arith.constant -0.0501743034 : f32
    %43 = vector.broadcast %cst_21 : f32 to vector<8x128xf32>
    %44 = arith.addf %42, %43 : vector<8x128xf32>
    %45 = arith.mulf %44, %31 : vector<8x128xf32>
    %cst_22 = arith.constant 0.0889789909 : f32
    %46 = vector.broadcast %cst_22 : f32 to vector<8x128xf32>
    %47 = arith.addf %45, %46 : vector<8x128xf32>
    %48 = arith.mulf %47, %31 : vector<8x128xf32>
    %cst_23 = arith.constant -0.214598805 : f32
    %49 = vector.broadcast %cst_23 : f32 to vector<8x128xf32>
    %50 = arith.addf %48, %49 : vector<8x128xf32>
    %51 = arith.mulf %50, %31 : vector<8x128xf32>
    %cst_24 = arith.constant 1.57079625 : f32
    %52 = vector.broadcast %cst_24 : f32 to vector<8x128xf32>
    %53 = arith.addf %51, %52 : vector<8x128xf32>
    %cst_25 = arith.constant 1.000000e+00 : f32
    %54 = vector.broadcast %cst_25 : f32 to vector<8x128xf32>
    %55 = arith.subf %54, %31 : vector<8x128xf32>
    %56 = math.sqrt %55 : vector<8x128xf32>
    %57 = arith.mulf %56, %53 : vector<8x128xf32>
    %cst_26 = arith.constant 0.000000e+00 : f32
    %58 = vector.broadcast %cst_26 : f32 to vector<8x128xf32>
    %59 = arith.cmpf oge, %29, %58 : vector<8x128xf32>
    %cst_27 = arith.constant 3.14159274 : f32
    %60 = vector.broadcast %cst_27 : f32 to vector<8x128xf32>
    %61 = arith.subf %60, %57 : vector<8x128xf32>
    %62 = arith.select %59, %57, %61 : vector<8x128xi1>, vector<8x128xf32>
    %c0_28 = arith.constant 0 : index
    %c0_29 = arith.constant 0 : index
    %63 = vector.load %arg3[%c0_28, %c0_29] : memref<8x128xf32, #tpu.memory_space<vmem>>, vector<8x128xf32>
    %64 = arith.mulf %62, %63 : vector<8x128xf32>
    %65 = arith.addf %30, %64 : vector<8x128xf32>
    %c0_30 = arith.constant 0 : index
    %c0_31 = arith.constant 0 : index
    %66 = vector.load %arg5[%c0_30, %c0_31] : memref<8x128xf32, #tpu.memory_space<vmem>>, vector<8x128xf32>
    tpu.vector_store %arg5[%c0_30, %c0_31], %65 {strides = array<i32>} : memref<8x128xf32, #tpu.memory_space<vmem>>, vector<8x128xf32>,
    %c0_i32_32 = arith.constant 0 : i32
    %67 = arith.cmpi eq, %arg1, %c0_i32_32 : i32
    %68 = arith.extui %67 : i1 to i32
    %c0_i32_33 = arith.constant 0 : i32
    %69 = arith.cmpi ne, %68, %c0_i32_33 : i32
    scf.if %69 {
      %c0_34 = arith.constant 0 : index
      %c0_35 = arith.constant 0 : index
      %70 = vector.load %arg5[%c0_34, %c0_35] : memref<8x128xf32, #tpu.memory_space<vmem>>, vector<8x128xf32>
      %71 = vector.shape_cast %70 : vector<8x128xf32> to vector<1x8x128xf32>
      %cst_36 = arith.constant dense<0.000000e+00> : vector<1xf32>
      %72 = vector.multi_reduction <add>, %71, %cst_36 [1, 2] : vector<1x8x128xf32> to vector<1xf32>
      %73 = vector.shape_cast %72 : vector<1xf32> to vector<1x1x1xf32>
      %74 = vector.extract %73[0, 0, 0] : f32 from vector<1x1x1xf32>
      %75 = vector.broadcast %74 : f32 to vector<1x1xf32>
      %c0_37 = arith.constant 0 : index
      %c0_38 = arith.constant 0 : index
      %c0_39 = arith.constant 0 : index
      %76 = vector.load %arg4[%c0_37, %c0_38, %c0_39] : memref<1x1x1xf32, #tpu.memory_space<vmem>>, vector<1x1x1xf32>
      %77 = vector.shape_cast %76 : vector<1x1x1xf32> to vector<1x1xf32>
      %78 = vector.shape_cast %75 : vector<1x1xf32> to vector<1x1x1xf32>
      tpu.vector_store %arg4[%c0_37, %c0_38, %c0_39], %78 {strides = array<i32>} : memref<1x1x1xf32, #tpu.memory_space<vmem>>, vector<1x1x1xf32>,
    } else {
    }
    return
  }
  func.func @transform_0(%arg0: i32, %arg1: i32) -> (i32, i32, i32, i32) {
    %c0_i32 = arith.constant 0 : i32
    %c0_i32_0 = arith.constant 0 : i32
    %c0_i32_1 = arith.constant 0 : i32
    return %arg0, %c0_i32, %arg1, %c0_i32_0 : i32, i32, i32, i32
  }
  func.func @transform_1(%arg0: i32, %arg1: i32) -> (i32, i32) {
    %c0_i32 = arith.constant 0 : i32
    %c0_i32_0 = arith.constant 0 : i32
    return %arg1, %c0_i32 : i32, i32
  }
  func.func @transform_2(%arg0: i32, %arg1: i32) -> (i32, i32, i32) {
    %c0_i32 = arith.constant 0 : i32
    %c0_i32_0 = arith.constant 0 : i32
    %c0_i32_1 = arith.constant 0 : i32
    return %arg0, %c0_i32, %c0_i32_0 : i32, i32, i32
  }
}

</mosaic_0001>

<llo_original>
// kernel: tpu_custom_call.1
$region0: #{tpu_custom_call.1}
  #allocation0 [shape = 'u32[]', space=smem, size = 0x4, offset = 0x4, fixed_abs, tag = 'smem constant byte address 0x4 - core index']
  #allocation1 [shape = 'u32[144,128]{1,0:T(1,128)}', space=vmem, size = 0x12000, scoped, tag = 'internal scratch']
  #allocation2 [shape = 'f32[8,128]{1,0:T(8,128)}', space=vmem, size = 0x1000, scoped, tag = 'scratch operand']
  %s0 = inlined_call_operand.hbm [shape: f32[2,4,8,128], index: 0, kind: input, shape index: {}]
  %s1 = inlined_call_operand.hbm [shape: f32[8,128], index: 1, kind: input, shape index: {}]
  %s2 = inlined_call_operand.vmem [shape: f32[2,1,1], index: 2, kind: output, shape index: {}]
  %s3 = sld [smem:[#allocation0]]
  $region57: #{tpu_custom_call.1} parent=0
    _
  %s5 = ssub.s32 1, %s3
  %s6 = scalar_select 0, %s5, %s3
  $region1: #{tpu_custom_call.1} parent=0
    #allocation3 [shape = 'u8[32768]{0}', space=vmem, size = 0x8000, scoped, tag = 'input window, operand 0']
    #allocation4 [shape = 's32[2]{0}', space=sflag, size = 0x8, scoped, tag = 'scoped memory for tpu_custom_call.1']
    #allocation5 [shape = 'u8[4096]{0}', space=vmem, size = 0x1000, scoped, tag = 'input window, operand 1, single buffered']
    #allocation6 [shape = 's32[1]{0}', space=sflag, size = 0x4, scoped, tag = 'scoped memory for tpu_custom_call.1']
    %7 = vsyncpa [#allocation4], 0
    %s8 = scalar_lea.sflag [#allocation4], 1
    %9 = vsyncpa %s8, 0
    %10 = vsyncpa [#allocation6], 0
    loop: start=0, step=1, limit=4
    $region2: #{tpu_custom_call.1} parent=1 // loop_pre_header
      _
    $region3: #{tpu_custom_call.1} parent=1 // loop_header
      %s12 = sphi 0, %s16
      %p13 = scmp.ge.s32.totalorder %s12, 4
      %s19 = sphi 0, %s31
      %s20 = sphi 0, %s27
      %s21 = sphi 0, %s19
      %s22 = sphi 0, %s20
      %s23 = sphi 0, %s21
      %s24 = sphi 0, %s22
      %s36 = sphi 0, %s38
      %s39 = sphi 0, %s36
      %s40 = sphi 0, %s39
      %s56 = sphi 0, %s40
      %s62 = sphi 0, %s64
      %s65 = sphi 0, %s62
      %s66 = sphi 0, %s65
      %s82 = sphi 0, %s66
      %s88 = sphi 0, %s90
      %s91 = sphi 0, %s88
      %s92 = sphi 0, %s91
      %s108 = sphi 0, %s92
    $region4: #{tpu_custom_call.1} parent=1 // loop_header_branch
      %15 = sbr.rel (%p13) target = $region8
    $region5: #{tpu_custom_call.1} parent=1 // loop_body
      %s17 = ssub.s32 %s12, 1
      %s18 = ssub.s32 %s12, 2
      %s25 = sadd.s32 1, %s20
      %p26 = scmp.ge.s32.totalorder %s25, 1
      %s27 = scalar_select %p26, 0, %s25
      %s28 = sadd.s32 1, %s19
      %s29 = scalar_select %p26, %s28, %s19
      %p30 = scmp.ge.s32.totalorder %s29, 2
      %s31 = scalar_select %p30, 0, %s29
      %s32 = ssub.s32 %s19, %s31
      %s33 = ssub.s32 %s20, %s27
      %s34 = sor.u32 %s32, %s33
      %p35 = scmp.eq.s32.totalorder %s34, 0
      %s37 = sadd.s32 %s36, 1
      %s38 = scalar_select %p35, %s36, %s37
      %p41 = pneg %p35
      %p42 = scmp.eq.s32.totalorder %s12, 1
      %p43 = por %p41, %p42
      %p44 = scmp.ne.s32.totalorder %s36, %s39
      %p45 = scmp.eq.s32.totalorder %s12, 0
      %p46 = por %p44, %p45
      %p47 = scmp.ne.s32.totalorder %s36, %s39
      %p48 = scmp.eq.s32.totalorder %s17, 1
      %p49 = por %p47, %p48
      %p50 = scmp.ne.s32.totalorder %s39, %s40
      %p51 = scmp.eq.s32.totalorder %s17, 0
      %p52 = por %p50, %p51
      %p53 = scmp.ne.s32.totalorder %s39, %s40
      %p54 = scmp.eq.s32.totalorder %s18, 1
      %p55 = por %p53, %p54
      %p57 = scmp.ne.s32.totalorder %s40, %s56
      %p58 = scmp.eq.s32.totalorder %s18, 0
      %p59 = por %p57, %p58
      %s60 = ssub.s32 %s20, %s27
      %p61 = scmp.eq.s32.totalorder %s60, 0
      %s63 = sadd.s32 %s62, 1
      %s64 = scalar_select %p61, %s62, %s63
      %p67 = pneg %p61
      %p68 = scmp.eq.s32.totalorder %s12, 1
      %p69 = por %p67, %p68
      %p70 = scmp.ne.s32.totalorder %s62, %s65
      %p71 = scmp.eq.s32.totalorder %s12, 0
      %p72 = por %p70, %p71
      %p73 = scmp.ne.s32.totalorder %s62, %s65
      %p74 = scmp.eq.s32.totalorder %s17, 1
      %p75 = por %p73, %p74
      %p76 = scmp.ne.s32.totalorder %s65, %s66
      %p77 = scmp.eq.s32.totalorder %s17, 0
      %p78 = por %p76, %p77
      %p79 = scmp.ne.s32.totalorder %s65, %s66
      %p80 = scmp.eq.s32.totalorder %s18, 1
      %p81 = por %p79, %p80
      %p83 = scmp.ne.s32.totalorder %s66, %s82
      %p84 = scmp.eq.s32.totalorder %s18, 0
      %p85 = por %p83, %p84
      %s86 = ssub.s32 %s19, %s31
      %p87 = scmp.eq.s32.totalorder %s86, 0
      %s89 = sadd.s32 %s88, 1
      %s90 = scalar_select %p87, %s88, %s89
      %p93 = pneg %p87
      %p94 = scmp.eq.s32.totalorder %s12, 1
      %p95 = por %p93, %p94
      %p96 = scmp.ne.s32.totalorder %s88, %s91
      %p97 = scmp.eq.s32.totalorder %s12, 0
      %p98 = por %p96, %p97
      %p99 = scmp.ne.s32.totalorder %s88, %s91
      %p100 = scmp.eq.s32.totalorder %s17, 1
      %p101 = por %p99, %p100
      %p102 = scmp.ne.s32.totalorder %s91, %s92
      %p103 = scmp.eq.s32.totalorder %s17, 0
      %p104 = por %p102, %p103
      %p105 = scmp.ne.s32.totalorder %s91, %s92
      %p106 = scmp.eq.s32.totalorder %s18, 1
      %p107 = por %p105, %p106
      %p109 = scmp.ne.s32.totalorder %s92, %s108
      %p110 = scmp.eq.s32.totalorder %s18, 0
      %p111 = por %p109, %p110
      %p112 = scmp.le.s32.totalorder 1, %s12
      %p113 = scmp.lt.s32.totalorder %s12, 3
      %p114 = pnand %p112, %p113
      %p115 = pneg %p114
      // Predicated region
      $region9: #{tpu_custom_call.1} parent=5 // pred_check
        _
      $region10: #{tpu_custom_call.1} parent=5 // pred_check_branch
        %117 = sbr.rel (%p114) target = $region12
      $region11: #{tpu_custom_call.1} parent=5 // pred_region
        %s118 = ssub.s32 %s12, 1
        // Predicated region
        $region13: #{tpu_custom_call.1} parent=11 // pred_check
          %p119 = pneg %p78
        $region14: #{tpu_custom_call.1} parent=11 // pred_check_branch
          %121 = sbr.rel (%p119) target = $region16
        $region15: #{tpu_custom_call.1} parent=11 // pred_region
          %s123 = ssub.s32 128, 128
          %124 = vsyncadd [#allocation6], %s123
          %s125 = smul.addr %s22, 128
          %s126 = scalar_lea.hbm %s1, %s125
          %s128 = sshll.u32 [#allocation5], 4
          %s129 = int_to_ptr.vmem [resolvable:$true] %s128
          %131 = dma.hbm_to_vmem [thread:$0]  %s126, 128, %s129, [#allocation6]
        $region16: #{tpu_custom_call.1} parent=11 // pred_fallthru
          _
      $region12: #{tpu_custom_call.1} parent=5 // pred_fallthru
        _
      %p132 = scmp.lt.s32.totalorder %s12, 2
      // Predicated region
      $region17: #{tpu_custom_call.1} parent=5 // pred_check
        %p133 = pneg %p132
      $region18: #{tpu_custom_call.1} parent=5 // pred_check_branch
        %135 = sbr.rel (%p133) target = $region20
      $region19: #{tpu_custom_call.1} parent=5 // pred_region
        // Predicated region
        $region21: #{tpu_custom_call.1} parent=19 // pred_check
          %p136 = pneg %p46
        $region22: #{tpu_custom_call.1} parent=19 // pred_check_branch
          %138 = sbr.rel (%p136) target = $region24
        $region23: #{tpu_custom_call.1} parent=19 // pred_region
          %s139 = sand.u32 %s36, 1
          %s140 = scalar_lea.sflag [#allocation4], %s139
          %s141 = sand.u32 %s36, 1
          %s142 = smul.addr %s141, 32
          %s143 = scalar_lea.vmem [#allocation3], %s142
          %s145 = ssub.s32 512, 512
          %146 = vsyncadd %s140, %s145
          %s147 = smul.addr %s19, 4
          %s148 = sadd.s32 %s20, %s147
          %s149 = smul.addr %s148, 128
          %s150 = scalar_lea.hbm %s0, %s149
          %s151 = sshll.u32 %s143, 4
          %s152 = int_to_ptr.vmem [resolvable:$true] %s151
          %157 = dma.hbm_to_vmem [thread:$0]  %s150, 512, %s152, %s140, 128, 128, 8
        $region24: #{tpu_custom_call.1} parent=19 // pred_fallthru
          _
      $region20: #{tpu_custom_call.1} parent=5 // pred_fallthru
        _
      %p158 = scmp.le.s32.totalorder 1, %s12
      %p159 = scmp.lt.s32.totalorder %s12, 3
      %p160 = pnand %p158, %p159
      %p161 = pneg %p160
      // Predicated region
      $region25: #{tpu_custom_call.1} parent=5 // pred_check
        _
      $region26: #{tpu_custom_call.1} parent=5 // pred_check_branch
        %163 = sbr.rel (%p160) target = $region28
      $region27: #{tpu_custom_call.1} parent=5 // pred_region
        %s164 = ssub.s32 %s12, 1
        %s165 = sand.u32 %s39, 1
        %s166 = scalar_lea.sflag [#allocation4], %s165
        %s167 = sand.u32 %s39, 1
        %s168 = smul.addr %s167, 32
        %s169 = scalar_lea.vmem [#allocation3], %s168
        // Predicated region
        $region29: #{tpu_custom_call.1} parent=27 // pred_check
          %p170 = pneg %p52
        $region30: #{tpu_custom_call.1} parent=27 // pred_check_branch
          %172 = sbr.rel (%p170) target = $region32
        $region31: #{tpu_custom_call.1} parent=27 // pred_region
          %173 = dma.done %s166, 512
        $region32: #{tpu_custom_call.1} parent=27 // pred_fallthru
          _
        // Predicated region
        $region33: #{tpu_custom_call.1} parent=27 // pred_check
          %p174 = pneg %p78
        $region34: #{tpu_custom_call.1} parent=27 // pred_check_branch
          %176 = sbr.rel (%p174) target = $region36
        $region35: #{tpu_custom_call.1} parent=27 // pred_region
          %177 = dma.done [#allocation6], 128
        $region36: #{tpu_custom_call.1} parent=27 // pred_fallthru
          _
        %s178 = sand.u32 %s39, 1
        %s179 = scalar_lea.sflag [#allocation4], %s178
        %s180 = sand.u32 %s39, 1
        %s181 = smul.addr %s180, 32
        %s182 = scalar_lea.vmem [#allocation3], %s181
        %p183 = pneg %p52
        %p184 = pneg %p49
        %p185 = pneg %p78
        %p186 = pneg %p75
        %p187 = pneg %p104
        %p188 = pneg %p101
        %p189 = scmp.lt.s32.totalorder %s21, 1
        %s190 = scalar_select %p189, %s21, 1
        %s191 = scalar_lea.vmem %s2, %s190
        %p192 = scmp.lt.s32.totalorder %s21, 1
        %s193 = scalar_select %p192, %s21, 1
        %s194 = scalar_lea.vmem %s2, %s193
        %p195 = scmp.eq.s32.totalorder %s22, 0
        // Predicated region
        $region37: #{tpu_custom_call.1} parent=27 // pred_check
          %p196 = pneg %p195
        $region38: #{tpu_custom_call.1} parent=27 // pred_check_branch
          %198 = sbr.rel (%p196) target = $region40
        $region39: #{tpu_custom_call.1} parent=27 // pred_region
          %199 = vst [vmem:[#allocation2] sm:$0xff] 0.0
        $region40: #{tpu_custom_call.1} parent=27 // pred_fallthru
          _
        %v200 = vld [vmem:[%s169] sm:$0xff]
        %s201 = scalar_lea.vmem %s169, 8 [#allocation3]
        %v202 = vld [vmem:[%s201] sm:$0xff]
        %s203 = scalar_lea.vmem %s169, 16 [#allocation3]
        %v204 = vld [vmem:[%s203] sm:$0xff]
        %s205 = scalar_lea.vmem %s169, 24 [#allocation3]
        %v206 = vld [vmem:[%s205] sm:$0xff]
        %v207 = vmul.f32 %v200, %v202
        %v208 = vmul.f32 %v204, %v206
        %v209 = vadd.f32 %v207, %v208
        %v210 = vmul.f32 %v200, %v200
        %v211 = vmul.f32 %v204, %v204
        %v212 = vadd.f32 %v210, %v211
        %v213 = vrsqrt.pop %v212
        %v214 = vmul.f32 %v212, %v213
        %vm215 = vcmp.eq.f32.partialorder %v212, inf
        %v216 = vsel %vm215, %v212, %v214
        %vm217 = vcmp.eq.f32.partialorder %v212, 0.0
        %v218 = vand.u32 %v212, 2147483648
        %v219 = vsel %vm217, %v218, %v216
        %v220 = vmul.f32 %v202, %v202
        %v221 = vmul.f32 %v206, %v206
        %v222 = vadd.f32 %v220, %v221
        %v223 = vrsqrt.pop %v222
        %v224 = vmul.f32 %v222, %v223
        %vm225 = vcmp.eq.f32.partialorder %v222, inf
        %v226 = vsel %vm225, %v222, %v224
        %vm227 = vcmp.eq.f32.partialorder %v222, 0.0
        %v228 = vand.u32 %v222, 2147483648
        %v229 = vsel %vm227, %v228, %v226
        %v230 = vmul.f32 %v219, %v229
        %v231 = vadd.f32 %v230, 0.001
        %v232 = vrcp.pop %v231
        %v233 = vmul.f32 %v209, %v232
        %v234 = vmax.f32 %v233, -1.0
        %v235 = vmin.f32 %v234, 1.0
        %v236 = vld [vmem:[#allocation2] sm:$0xff]
        %v237 = vand.u32 2147483647, %v235
        %v238 = vmul.f32 %v237, -0.0012624911
        %v239 = vadd.f32 %v238, 0.00667009
        %v240 = vmul.f32 %v239, %v237
        %v241 = vadd.f32 %v240, -0.017088126
        %v242 = vmul.f32 %v241, %v237
        %v243 = vadd.f32 %v242, 0.03089188
        %v244 = vmul.f32 %v243, %v237
        %v245 = vadd.f32 %v244, -0.050174303
        %v246 = vmul.f32 %v245, %v237
        %v247 = vadd.f32 %v246, 0.08897899
        %v248 = vmul.f32 %v247, %v237
        %v249 = vadd.f32 %v248, -0.2145988
        %v250 = vmul.f32 %v249, %v237
        %v251 = vadd.f32 %v250, 1.5707963
        %v252 = vsub.f32 1.0, %v237
        %v253 = vrsqrt.pop %v252
        %v254 = vmul.f32 %v252, %v253
        %vm255 = vcmp.eq.f32.partialorder %v252, inf
        %v256 = vsel %vm255, %v252, %v254
        %vm257 = vcmp.eq.f32.partialorder %v252, 0.0
        %v258 = vand.u32 %v252, 2147483648
        %v259 = vsel %vm257, %v258, %v256
        %v260 = vmul.f32 %v259, %v251
        %vm261 = vcmp.ge.f32.partialorder %v235, 0.0
        %v262 = vsub.f32 3.1415927, %v260
        %v263 = vsel %vm261, %v260, %v262
        %v264 = vld [vmem:[#allocation5] sm:$0xff]
        %v265 = vmul.f32 %v263, %v264
        %v266 = vadd.f32 %v236, %v265
        %267 = vst [vmem:[#allocation2] sm:$0xff] %v266
        // Predicated region
        $region41: #{tpu_custom_call.1} parent=27 // pred_check
          %p268 = pneg %p195
        $region42: #{tpu_custom_call.1} parent=27 // pred_check_branch
          %270 = sbr.rel (%p268) target = $region44
        $region43: #{tpu_custom_call.1} parent=27 // pred_region
          %v271 = vld [vmem:[#allocation2] sm:$0xff]
          %272 = vadd.xlane.f32.xlu0 %v271
          %v273 = vpop.xlane.xlu0 %272
          %v274 = vrot.slane %v273, 4
          %v275 = vadd.f32 %v273, %v274
          %v276 = vrot.slane %v275, 2
          %v277 = vadd.f32 %v275, %v276
          %v278 = vrot.slane %v277, 1
          %v279 = vadd.f32 %v277, %v278
          %s280 = vtos %v279
          %v281 = vstv %s280
          %vm282 = vcmask 0
          %283 = vst.msk [vmem:[%s194] sm:$0x1] %vm282, %v281
        $region44: #{tpu_custom_call.1} parent=27 // pred_fallthru
          _
        %p284 = scmp.lt.s32.totalorder %s21, 1
        %s285 = scalar_select %p284, %s21, 1
        %s286 = scalar_lea.vmem %s2, %s285
        // Predicated region
        $region45: #{tpu_custom_call.1} parent=27 // pred_check
          %p287 = pneg %p101
        $region46: #{tpu_custom_call.1} parent=27 // pred_check_branch
          %289 = sbr.rel (%p287) target = $region48
        $region47: #{tpu_custom_call.1} parent=27 // pred_region
          _
        $region48: #{tpu_custom_call.1} parent=27 // pred_fallthru
          _
      $region28: #{tpu_custom_call.1} parent=5 // pred_fallthru
        _
      %p290 = scmp.le.s32.totalorder 2, %s12
      // Predicated region
      $region49: #{tpu_custom_call.1} parent=5 // pred_check
        %p291 = pneg %p290
      $region50: #{tpu_custom_call.1} parent=5 // pred_check_branch
        %293 = sbr.rel (%p291) target = $region52
      $region51: #{tpu_custom_call.1} parent=5 // pred_region
        %s294 = ssub.s32 %s12, 2
        // Predicated region
        $region53: #{tpu_custom_call.1} parent=51 // pred_check
          %p295 = pneg %p107
        $region54: #{tpu_custom_call.1} parent=51 // pred_check_branch
          %297 = sbr.rel (%p295) target = $region56
        $region55: #{tpu_custom_call.1} parent=51 // pred_region
          %p298 = scmp.lt.s32.totalorder %s23, 1
          %s299 = scalar_select %p298, %s23, 1
          %s300 = scalar_lea.vmem %s2, %s299
        $region56: #{tpu_custom_call.1} parent=51 // pred_fallthru
          _
      $region52: #{tpu_custom_call.1} parent=5 // pred_fallthru
        _
    $region6: #{tpu_custom_call.1} parent=1 // loop_footer
      %s16 = sadd.s32 1, %s12
    $region7: #{tpu_custom_call.1} parent=1 // loop_footer_branch
      %11 = sbr.rel target = $region3
    $region8: #{tpu_custom_call.1} parent=1 // loop_exit
      _
    %301 = vsyncpa [#allocation4], 1
    %s302 = scalar_lea.sflag [#allocation4], 1
    %303 = vsyncpa %s302, 1
    %304 = vsyncpa [#allocation6], 1

</llo_original>
